<compile_context>
chip_gen: v5e
topology: v5e:2x2
jax: 0.10.0
libtpu: 0.0.40
codegen_flags: <defaults>
</compile_context>

<pallas_src>
import functools
import math

import numpy as np
import jax
import jax.numpy as jnp
from jax.experimental import pallas as pl
from jax.experimental.pallas import tpu as pltpu


_VMEM_SPEC = pl.BlockSpec(memory_space=pltpu.MemorySpace.VMEM)
_EPS = 1e-5
_SLOPE = 0.2
_LANES = 128


# ----------------------------------------------------------------------------
# Host-side (numpy) conv factorization — parameter preprocessing only.
# ----------------------------------------------------------------------------
def _conv_factors_np(w_oihw, H, W, stride, pad, batch):
    """Factorize Conv2d(kh x kw, stride, pad) acting on a 2-D activation slab.

    With A[(n*H+h), (w*Cin+c)] = x[n, c, h, w], the conv output slab
        O[(n*Ho+i), (j*Cout+co)] = conv(x)[n, co, i, j]
    satisfies
        O = concat_di(R[di] @ A, axis=1) @ Mv
    where
        R[di] : [batch*Ho, batch*H]  0/1 row-tap selector (stride + zero
                                     padding folded in, block-diag over batch)
        Mv    : [kh*W*Cin, Wo*Cout]  kernel weights with kernel-row blocks
                                     vstacked to match the lane concat order.
    """
    Cout, Cin, kh, kw = (int(d) for d in w_oihw.shape)
    Ho = (H + 2 * pad - kh) // stride + 1
    Wo = (W + 2 * pad - kw) // stride + 1

    R = []
    for di in range(kh):
        r = np.zeros((batch * Ho, batch * H), np.float32)
        for n in range(batch):
            for i in range(Ho):
                h = i * stride + di - pad
                if 0 <= h < H:
                    r[n * Ho + i, n * H + h] = 1.0
        R.append(r)

    Wt = np.transpose(np.asarray(w_oihw, np.float32), (2, 3, 1, 0))  # [kh,kw,Cin,Cout]
    Mv = np.zeros((kh, W * Cin, Wo * Cout), np.float32)
    for di in range(kh):
        acc = np.zeros((W, Cin, Wo, Cout), np.float32)
        for dj in range(kw):
            for j in range(Wo):
                w_pos = j * stride + dj - pad
                if 0 <= w_pos < W:
                    acc[w_pos, :, j, :] += Wt[di, dj]
        Mv[di] = acc.reshape(W * Cin, Wo * Cout)
    return R, Mv.reshape(kh * W * Cin, Wo * Cout), (Ho, Wo, Cout)


class _SlabPacker:
    """Packs 2-D numpy pieces into one lane-dense [rows, 128] slab (one DMA)."""

    def __init__(self, row_align):
        self.row_align = row_align
        self.items = []
        self.cur = 0

    def add(self, arr):
        arr = np.asarray(arr, np.float32)
        r, c = arr.shape
        assert c <= _LANES, (r, c)
        meta = (self.cur, r, c)              # (row offset, rows, cols) — static
        self.items.append((arr, meta))
        self.cur += -(-r // self.row_align) * self.row_align
        return meta

    def finalize(self, dtype):
        rows = max(self.cur, self.row_align)
        slab = np.zeros((rows, _LANES), np.float32)
        for arr, (off, r, c) in self.items:
            slab[off:off + r, :c] = arr
        return jnp.asarray(slab, dtype)


# ----------------------------------------------------------------------------
# Fused encoder kernel (single pallas_call, no grid — whole problem in VMEM)
# ----------------------------------------------------------------------------
def _make_encoder_kernel(layout):
    def _piece(ref, meta):
        off, rows, cols = meta
        return ref[pl.ds(off, rows), pl.ds(0, cols)]

    def _leaky(x):
        return jnp.where(x > 0, x, _SLOPE * x)

    def _conv(h_bf, pb_ref, st):
        # kh row-tap gathers (0/1 selectors, values stay exactly bf16),
        # lane-concatenated, then ONE K = kh*W*Cin bf16 contraction.
        taps = [jnp.dot(_piece(pb_ref, m), h_bf, preferred_element_type=jnp.float32)
                for m in st["r"]]
        t = jnp.concatenate(taps, axis=1).astype(jnp.bfloat16)
        return jnp.dot(t, _piece(pb_ref, st["m"]), preferred_element_type=jnp.float32)

    def kernel(a_ref, pb_ref, pf_ref, o_ref):
        # input conv (no bias) + LeakyReLU(0.2); activation arrives as bf16 slab
        h = _leaky(_conv(a_ref[...], pb_ref, layout["in"]))

        # pyramid: conv (no bias) -> BatchNorm(batch stats) -> LeakyReLU(0.2)
        for st in layout["pyr"]:
            h = _conv(h.astype(jnp.bfloat16), pb_ref, st)       # [N*Ho, Wo*Cout] f32
            # fused single-pass stats: [sum; sum_sq] in one stacked bf16 dot;
            # the gather matrix replicates per-channel totals at every column.
            s1 = jnp.sum(h, axis=0, keepdims=True)
            s2 = jnp.sum(h * h, axis=0, keepdims=True)
            s12 = jnp.concatenate([s1, s2], axis=0).astype(jnp.bfloat16)
            stats = jnp.dot(s12, _piece(pb_ref, st["g"]),
                            preferred_element_type=jnp.float32) * st["inv_cnt"]
            mean = stats[0:1, :]                                  # [1, Wo*Cout]
            var = jnp.maximum(stats[1:2, :] - mean * mean, 0.0)   # biased, clamped
            scale = _piece(pf_ref, st["gamma"]) * jax.lax.rsqrt(var + _EPS)
            shift = _piece(pf_ref, st["beta"]) - mean * scale
            h = _leaky(h * scale + shift)

        # merged heads (conv1 | conv2 along Cout), bias added; 128-lane output.
        hd = layout["head"]
        o = _conv(h.astype(jnp.bfloat16), pb_ref, hd) + _piece(pf_ref, hd["bias"])
        o_ref[...] = o.astype(o_ref.dtype)

    return kernel


# ----------------------------------------------------------------------------
# _Encoder parameters + forward builder (factorization hoisted out of jit)
# ----------------------------------------------------------------------------
def init_encoder_params(key, image_size, nc, ngf, nz):
    n = math.log2(image_size)
    assert n == round(n) and n >= 3
    n = int(n)
    params = {"pyramid": []}
    key, k0 = jax.random.split(key)
    params["w_in"] = 0.05 * jax.random.normal(k0, (ngf, nc, 4, 4), jnp.float32)
    for i in range(n - 3):
        key, kw = jax.random.split(key)
        cin, cout = ngf * 2 ** i, ngf * 2 ** (i + 1)
        params["pyramid"].append(
            dict(w=0.05 * jax.random.normal(kw, (cout, cin, 4, 4), jnp.float32),
                 gamma=jnp.ones((cout,), jnp.float32),
                 beta=jnp.zeros((cout,), jnp.float32)))
    ctop = ngf * 2 ** (n - 3)
    key, k1, k2, k3, k4 = jax.random.split(key, 5)
    params["w_conv1"] = 0.05 * jax.random.normal(k1, (nz, ctop, 4, 4), jnp.float32)
    params["b_conv1"] = 0.05 * jax.random.normal(k2, (nz,), jnp.float32)
    params["w_conv2"] = 0.05 * jax.random.normal(k3, (nz, ctop, 4, 4), jnp.float32)
    params["b_conv2"] = 0.05 * jax.random.normal(k4, (nz,), jnp.float32)
    return params


def build_encoder_forward(params, image_size, batch):
    """Builds packed parameter slabs ONCE and returns a jitted forward(x)."""
    nz = int(params["w_conv1"].shape[0])
    nc = int(params["w_in"].shape[1])

    pb = _SlabPacker(row_align=16)     # bf16 slab (MXU operands)
    pf = _SlabPacker(row_align=8)      # f32 slab (epilogue constants)
    layout = {"pyr": []}

    # input conv: k=4, stride 2, pad 1
    H = W = image_size
    R, Mv, (Ho, Wo, Co) = _conv_factors_np(params["w_in"], H, W, 2, 1, batch)
    layout["in"] = {"r": [pb.add(r) for r in R], "m": pb.add(Mv)}

    # pyramid stages: conv(s=2,p=1) + BN(batch stats) + LeakyReLU
    for layer in params["pyramid"]:
        R, Mv, (Ho, Wo, Co) = _conv_factors_np(layer["w"], Ho, Wo, 2, 1, batch)
        gather_wide = np.tile(np.eye(Co, dtype=np.float32), (Wo, Wo))  # [WoCo, WoCo]
        gamma_w = np.tile(np.asarray(layer["gamma"], np.float32), Wo).reshape(1, Wo * Co)
        beta_w = np.tile(np.asarray(layer["beta"], np.float32), Wo).reshape(1, Wo * Co)
        layout["pyr"].append({
            "r": [pb.add(r) for r in R],
            "m": pb.add(Mv),
            "g": pb.add(gather_wide),
            "gamma": pf.add(gamma_w),
            "beta": pf.add(beta_w),
            "inv_cnt": 1.0 / float(batch * Ho * Wo),
        })

    # merged heads (conv1 | conv2 along Cout), 4x4 valid conv -> 1x1 spatial;
    # zero-pad output columns to 128 so the last dot / store are lane-dense.
    w_heads = np.concatenate([np.asarray(params["w_conv1"], np.float32),
                              np.asarray(params["w_conv2"], np.float32)], axis=0)
    b_heads = np.concatenate([np.asarray(params["b_conv1"], np.float32),
                              np.asarray(params["b_conv2"], np.float32)], axis=0)
    R, Mv, (Ho_h, Wo_h, Co_h) = _conv_factors_np(w_heads, Ho, Wo, 1, 0, batch)
    assert Ho_h == 1 and Wo_h == 1 and Co_h == 2 * nz and Co_h <= _LANES
    Mv_pad = np.zeros((Mv.shape[0], _LANES), np.float32)
    Mv_pad[:, :Co_h] = Mv
    bias_pad = np.zeros((1, _LANES), np.float32)
    bias_pad[0, :Co_h] = b_heads
    layout["head"] = {"r": [pb.add(r) for r in R], "m": pb.add(Mv_pad),
                      "bias": pf.add(bias_pad)}

    pb_slab = pb.finalize(jnp.bfloat16)
    pf_slab = pf.finalize(jnp.float32)

    call = pl.pallas_call(
        _make_encoder_kernel(layout),
        out_shape=jax.ShapeDtypeStruct((batch, _LANES), jnp.float32),
        in_specs=[_VMEM_SPEC, _VMEM_SPEC, _VMEM_SPEC],
        out_specs=_VMEM_SPEC,
    )

    N = batch

    @jax.jit
    def forward(pb_arr, pf_arr, x):
        # NCHW -> [N*H, W*C] NHWC row slab; the only activation layout op in XLA.
        a0 = jnp.transpose(x, (0, 2, 3, 1)).reshape(N * image_size, image_size * nc)
        out = call(a0.astype(jnp.bfloat16), pb_arr, pf_arr)       # [N, 128]
        o1 = out[:, :nz].reshape(N, nz, 1, 1)
        o2 = out[:, nz:2 * nz].reshape(N, nz, 1, 1)
        return o1, o2

    return functools.partial(forward, pb_slab, pf_slab)


# ----------------------------------------------------------------------------
# Pure-JAX f32 reference (sanity check only)
# ----------------------------------------------------------------------------
def _reference_forward(params, x):
    def conv(h, w, b, stride, pad):
        out = jax.lax.conv_general_dilated(
            h, w, (stride, stride), [(pad, pad), (pad, pad)],
            dimension_numbers=("NCHW", "OIHW", "NCHW"))
        if b is not None:
            out = out + b.reshape(1, -1, 1, 1)
        return out

    h = conv(x, params["w_in"], None, 2, 1)
    h = jnp.where(h > 0, h, _SLOPE * h)
    for layer in params["pyramid"]:
        h = conv(h, layer["w"], None, 2, 1)
        mean = jnp.mean(h, axis=(0, 2, 3), keepdims=True)
        var = jnp.mean((h - mean) ** 2, axis=(0, 2, 3), keepdims=True)
        h = (h - mean) * jax.lax.rsqrt(var + _EPS)
        h = h * layer["gamma"].reshape(1, -1, 1, 1) + layer["beta"].reshape(1, -1, 1, 1)
        h = jnp.where(h > 0, h, _SLOPE * h)
    o1 = conv(h, params["w_conv1"], params["b_conv1"], 1, 0)
    o2 = conv(h, params["w_conv2"], params["b_conv2"], 1, 0)
    return o1, o2


if __name__ == "__main__":
    IMAGE_SIZE, NC, NGF, NZ, BATCH = 16, 4, 8, 16, 2

    key = jax.random.PRNGKey(0)
    key, kx = jax.random.split(key)
    x = jax.random.normal(kx, (BATCH, NC, IMAGE_SIZE, IMAGE_SIZE), jnp.float32)
    params = init_encoder_params(key, IMAGE_SIZE, NC, NGF, NZ)

    forward = build_encoder_forward(params, IMAGE_SIZE, BATCH)
    out1, out2 = forward(x)
    jax.block_until_ready(out1)
    jax.block_until_ready(out2)

    assert out1.shape == (BATCH, NZ, 1, 1), out1.shape
    assert out2.shape == (BATCH, NZ, 1, 1), out2.shape
    assert bool(jnp.all(jnp.isfinite(out1))) and bool(jnp.all(jnp.isfinite(out2)))

    # sanity check against an f32 XLA reference (loose tol: bf16 MXU operands).
    ref1, ref2 = _reference_forward(params, x)
    assert np.allclose(np.asarray(out1), np.asarray(ref1), rtol=1e-1, atol=1e-1), \
        float(np.max(np.abs(np.asarray(out1) - np.asarray(ref1))))
    assert np.allclose(np.asarray(out2), np.asarray(ref2), rtol=1e-1, atol=1e-1), \
        float(np.max(np.abs(np.asarray(out2) - np.asarray(ref2))))

    print("KERNEL_OK")
</pallas_src>

<mosaic_0001>
module attributes {stable_mosaic.version = 11 : i64} {
  func.func @kernel(%arg0: memref<32x64xbf16, #tpu.memory_space<vmem>>, %arg1: memref<1024x128xbf16, #tpu.memory_space<vmem>>, %arg2: memref<24x128xf32, #tpu.memory_space<vmem>>, %arg3: memref<2x128xf32, #tpu.memory_space<vmem>>) attributes {dimension_semantics = [], scalar_prefetch = 0 : i64, scratch_operands = 0 : i64, tpu.core_type = #tpu.core_type<tc>} {
    %c0 = arith.constant 0 : index
    %c0_0 = arith.constant 0 : index
    %0 = vector.load %arg0[%c0, %c0_0] : memref<32x64xbf16, #tpu.memory_space<vmem>>, vector<32x64xbf16>
    %c0_1 = arith.constant 0 : index
    %c0_2 = arith.constant 0 : index
    %1 = vector.load %arg1[%c0_1, %c0_2] : memref<1024x128xbf16, #tpu.memory_space<vmem>>, vector<16x32xbf16>
    %cst = arith.constant dense<0.000000e+00> : vector<16x64xf32>
    %2 = tpu.matmul %1, %0, %cst {dimension_numbers = #tpu.dot_dimension_numbers<[1], [0], [0], [1], [0, 0, 1, 1], [], []>} : vector<16x32xbf16>, vector<32x64xbf16>, vector<16x64xf32> -> vector<16x64xf32>
    %c16 = arith.constant 16 : index
    %c0_3 = arith.constant 0 : index
    %3 = vector.load %arg1[%c16, %c0_3] : memref<1024x128xbf16, #tpu.memory_space<vmem>>, vector<16x32xbf16>
    %cst_4 = arith.constant dense<0.000000e+00> : vector<16x64xf32>
    %4 = tpu.matmul %3, %0, %cst_4 {dimension_numbers = #tpu.dot_dimension_numbers<[1], [0], [0], [1], [0, 0, 1, 1], [], []>} : vector<16x32xbf16>, vector<32x64xbf16>, vector<16x64xf32> -> vector<16x64xf32>
    %c32 = arith.constant 32 : index
    %c0_5 = arith.constant 0 : index
    %5 = vector.load %arg1[%c32, %c0_5] : memref<1024x128xbf16, #tpu.memory_space<vmem>>, vector<16x32xbf16>
    %cst_6 = arith.constant dense<0.000000e+00> : vector<16x64xf32>
    %6 = tpu.matmul %5, %0, %cst_6 {dimension_numbers = #tpu.dot_dimension_numbers<[1], [0], [0], [1], [0, 0, 1, 1], [], []>} : vector<16x32xbf16>, vector<32x64xbf16>, vector<16x64xf32> -> vector<16x64xf32>
    %c48 = arith.constant 48 : index
    %c0_7 = arith.constant 0 : index
    %7 = vector.load %arg1[%c48, %c0_7] : memref<1024x128xbf16, #tpu.memory_space<vmem>>, vector<16x32xbf16>
    %cst_8 = arith.constant dense<0.000000e+00> : vector<16x64xf32>
    %8 = tpu.matmul %7, %0, %cst_8 {dimension_numbers = #tpu.dot_dimension_numbers<[1], [0], [0], [1], [0, 0, 1, 1], [], []>} : vector<16x32xbf16>, vector<32x64xbf16>, vector<16x64xf32> -> vector<16x64xf32>
    %9 = tpu.concatenate %2, %4, %6, %8 in 1 : vector<16x64xf32>, vector<16x64xf32>, vector<16x64xf32>, vector<16x64xf32> -> vector<16x256xf32>
    %10 = arith.truncf %9 : vector<16x256xf32> to vector<16x256xbf16>
    %c64 = arith.constant 64 : index
    %c0_9 = arith.constant 0 : index
    %11 = vector.load %arg1[%c64, %c0_9] : memref<1024x128xbf16, #tpu.memory_space<vmem>>, vector<256x64xbf16>
    %cst_10 = arith.constant dense<0.000000e+00> : vector<16x64xf32>
    %12 = tpu.matmul %10, %11, %cst_10 {dimension_numbers = #tpu.dot_dimension_numbers<[1], [0], [0], [1], [0, 0, 1, 1], [], []>} : vector<16x256xbf16>, vector<256x64xbf16>, vector<16x64xf32> -> vector<16x64xf32>
    %cst_11 = arith.constant 0.000000e+00 : f32
    %13 = vector.broadcast %cst_11 : f32 to vector<16x64xf32>
    %14 = arith.cmpf ogt, %12, %13 : vector<16x64xf32>
    %cst_12 = arith.constant 2.000000e-01 : f32
    %15 = vector.broadcast %cst_12 : f32 to vector<16x64xf32>
    %16 = arith.mulf %15, %12 : vector<16x64xf32>
    %17 = arith.select %14, %12, %16 : vector<16x64xi1>, vector<16x64xf32>
    %18 = arith.truncf %17 : vector<16x64xf32> to vector<16x64xbf16>
    %c320 = arith.constant 320 : index
    %c0_13 = arith.constant 0 : index
    %19 = vector.load %arg1[%c320, %c0_13] : memref<1024x128xbf16, #tpu.memory_space<vmem>>, vector<8x16xbf16>
    %cst_14 = arith.constant dense<0.000000e+00> : vector<8x64xf32>
    %20 = tpu.matmul %19, %18, %cst_14 {dimension_numbers = #tpu.dot_dimension_numbers<[1], [0], [0], [1], [0, 0, 1, 1], [], []>} : vector<8x16xbf16>, vector<16x64xbf16>, vector<8x64xf32> -> vector<8x64xf32>
    %c336 = arith.constant 336 : index
    %c0_15 = arith.constant 0 : index
    %21 = vector.load %arg1[%c336, %c0_15] : memref<1024x128xbf16, #tpu.memory_space<vmem>>, vector<8x16xbf16>
    %cst_16 = arith.constant dense<0.000000e+00> : vector<8x64xf32>
    %22 = tpu.matmul %21, %18, %cst_16 {dimension_numbers = #tpu.dot_dimension_numbers<[1], [0], [0], [1], [0, 0, 1, 1], [], []>} : vector<8x16xbf16>, vector<16x64xbf16>, vector<8x64xf32> -> vector<8x64xf32>
    %c352 = arith.constant 352 : index
    %c0_17 = arith.constant 0 : index
    %23 = vector.load %arg1[%c352, %c0_17] : memref<1024x128xbf16, #tpu.memory_space<vmem>>, vector<8x16xbf16>
    %cst_18 = arith.constant dense<0.000000e+00> : vector<8x64xf32>
    %24 = tpu.matmul %23, %18, %cst_18 {dimension_numbers = #tpu.dot_dimension_numbers<[1], [0], [0], [1], [0, 0, 1, 1], [], []>} : vector<8x16xbf16>, vector<16x64xbf16>, vector<8x64xf32> -> vector<8x64xf32>
    %c368 = arith.constant 368 : index
    %c0_19 = arith.constant 0 : index
    %25 = vector.load %arg1[%c368, %c0_19] : memref<1024x128xbf16, #tpu.memory_space<vmem>>, vector<8x16xbf16>
    %cst_20 = arith.constant dense<0.000000e+00> : vector<8x64xf32>
    %26 = tpu.matmul %25, %18, %cst_20 {dimension_numbers = #tpu.dot_dimension_numbers<[1], [0], [0], [1], [0, 0, 1, 1], [], []>} : vector<8x16xbf16>, vector<16x64xbf16>, vector<8x64xf32> -> vector<8x64xf32>
    %27 = tpu.concatenate %20, %22, %24, %26 in 1 : vector<8x64xf32>, vector<8x64xf32>, vector<8x64xf32>, vector<8x64xf32> -> vector<8x256xf32>
    %28 = arith.truncf %27 : vector<8x256xf32> to vector<8x256xbf16>
    %c384 = arith.constant 384 : index
    %c0_21 = arith.constant 0 : index
    %29 = vector.load %arg1[%c384, %c0_21] : memref<1024x128xbf16, #tpu.memory_space<vmem>>, vector<256x64xbf16>
    %cst_22 = arith.constant dense<0.000000e+00> : vector<8x64xf32>
    %30 = tpu.matmul %28, %29, %cst_22 {dimension_numbers = #tpu.dot_dimension_numbers<[1], [0], [0], [1], [0, 0, 1, 1], [], []>} : vector<8x256xbf16>, vector<256x64xbf16>, vector<8x64xf32> -> vector<8x64xf32>
    %cst_23 = arith.constant dense<0.000000e+00> : vector<64xf32>
    %31 = vector.multi_reduction <add>, %30, %cst_23 [0] : vector<8x64xf32> to vector<64xf32>
    %32 = vector.shape_cast %31 : vector<64xf32> to vector<1x64xf32>
    %33 = arith.mulf %30, %30 : vector<8x64xf32>
    %cst_24 = arith.constant dense<0.000000e+00> : vector<64xf32>
    %34 = vector.multi_reduction <add>, %33, %cst_24 [0] : vector<8x64xf32> to vector<64xf32>
    %35 = vector.shape_cast %34 : vector<64xf32> to vector<1x64xf32>
    %36 = tpu.concatenate %32, %35 in 0 : vector<1x64xf32>, vector<1x64xf32> -> vector<2x64xf32>
    %37 = arith.truncf %36 : vector<2x64xf32> to vector<2x64xbf16>
    %c640 = arith.constant 640 : index
    %c0_25 = arith.constant 0 : index
    %38 = vector.load %arg1[%c640, %c0_25] : memref<1024x128xbf16, #tpu.memory_space<vmem>>, vector<64x64xbf16>
    %cst_26 = arith.constant dense<0.000000e+00> : vector<2x64xf32>
    %39 = tpu.matmul %37, %38, %cst_26 {dimension_numbers = #tpu.dot_dimension_numbers<[1], [0], [0], [1], [0, 0, 1, 1], [], []>} : vector<2x64xbf16>, vector<64x64xbf16>, vector<2x64xf32> -> vector<2x64xf32>
    %cst_27 = arith.constant 3.125000e-02 : f32
    %40 = vector.broadcast %cst_27 : f32 to vector<2x64xf32>
    %41 = arith.mulf %39, %40 : vector<2x64xf32>
    %42 = vector.extract_strided_slice %41 {offsets = [0, 0], sizes = [1, 64], strides = [1, 1]} : vector<2x64xf32> to vector<1x64xf32>
    %43 = vector.extract_strided_slice %41 {offsets = [1, 0], sizes = [1, 64], strides = [1, 1]} : vector<2x64xf32> to vector<1x64xf32>
    %44 = arith.mulf %42, %42 : vector<1x64xf32>
    %45 = arith.subf %43, %44 : vector<1x64xf32>
    %cst_28 = arith.constant 0.000000e+00 : f32
    %46 = vector.broadcast %cst_28 : f32 to vector<1x64xf32>
    %47 = arith.maximumf %45, %46 : vector<1x64xf32>
    %c0_29 = arith.constant 0 : index
    %c0_30 = arith.constant 0 : index
    %48 = vector.load %arg2[%c0_29, %c0_30] : memref<24x128xf32, #tpu.memory_space<vmem>>, vector<1x64xf32>
    %cst_31 = arith.constant 9.99999974E-6 : f32
    %49 = vector.broadcast %cst_31 : f32 to vector<1x64xf32>
    %50 = arith.addf %47, %49 : vector<1x64xf32>
    %51 = math.rsqrt %50 : vector<1x64xf32>
    %52 = arith.mulf %48, %51 : vector<1x64xf32>
    %c8 = arith.constant 8 : index
    %c0_32 = arith.constant 0 : index
    %53 = vector.load %arg2[%c8, %c0_32] : memref<24x128xf32, #tpu.memory_space<vmem>>, vector<1x64xf32>
    %54 = arith.mulf %42, %52 : vector<1x64xf32>
    %55 = arith.subf %53, %54 : vector<1x64xf32>
    %56 = vector.broadcast %52 : vector<1x64xf32> to vector<8x64xf32>
    %57 = arith.mulf %30, %56 : vector<8x64xf32>
    %58 = vector.broadcast %55 : vector<1x64xf32> to vector<8x64xf32>
    %59 = arith.addf %57, %58 : vector<8x64xf32>
    %cst_33 = arith.constant 0.000000e+00 : f32
    %60 = vector.broadcast %cst_33 : f32 to vector<8x64xf32>
    %61 = arith.cmpf ogt, %59, %60 : vector<8x64xf32>
    %cst_34 = arith.constant 2.000000e-01 : f32
    %62 = vector.broadcast %cst_34 : f32 to vector<8x64xf32>
    %63 = arith.mulf %62, %59 : vector<8x64xf32>
    %64 = arith.select %61, %59, %63 : vector<8x64xi1>, vector<8x64xf32>
    %65 = arith.truncf %64 : vector<8x64xf32> to vector<8x64xbf16>
    %c704 = arith.constant 704 : index
    %c0_35 = arith.constant 0 : index
    %66 = vector.load %arg1[%c704, %c0_35] : memref<1024x128xbf16, #tpu.memory_space<vmem>>, vector<2x8xbf16>
    %cst_36 = arith.constant dense<0.000000e+00> : vector<2x64xf32>
    %67 = tpu.matmul %66, %65, %cst_36 {dimension_numbers = #tpu.dot_dimension_numbers<[1], [0], [0], [1], [0, 0, 1, 1], [], []>} : vector<2x8xbf16>, vector<8x64xbf16>, vector<2x64xf32> -> vector<2x64xf32>
    %c720 = arith.constant 720 : index
    %c0_37 = arith.constant 0 : index
    %68 = vector.load %arg1[%c720, %c0_37] : memref<1024x128xbf16, #tpu.memory_space<vmem>>, vector<2x8xbf16>
    %cst_38 = arith.constant dense<0.000000e+00> : vector<2x64xf32>
    %69 = tpu.matmul %68, %65, %cst_38 {dimension_numbers = #tpu.dot_dimension_numbers<[1], [0], [0], [1], [0, 0, 1, 1], [], []>} : vector<2x8xbf16>, vector<8x64xbf16>, vector<2x64xf32> -> vector<2x64xf32>
    %c736 = arith.constant 736 : index
    %c0_39 = arith.constant 0 : index
    %70 = vector.load %arg1[%c736, %c0_39] : memref<1024x128xbf16, #tpu.memory_space<vmem>>, vector<2x8xbf16>
    %cst_40 = arith.constant dense<0.000000e+00> : vector<2x64xf32>
    %71 = tpu.matmul %70, %65, %cst_40 {dimension_numbers = #tpu.dot_dimension_numbers<[1], [0], [0], [1], [0, 0, 1, 1], [], []>} : vector<2x8xbf16>, vector<8x64xbf16>, vector<2x64xf32> -> vector<2x64xf32>
    %c752 = arith.constant 752 : index
    %c0_41 = arith.constant 0 : index
    %72 = vector.load %arg1[%c752, %c0_41] : memref<1024x128xbf16, #tpu.memory_space<vmem>>, vector<2x8xbf16>
    %cst_42 = arith.constant dense<0.000000e+00> : vector<2x64xf32>
    %73 = tpu.matmul %72, %65, %cst_42 {dimension_numbers = #tpu.dot_dimension_numbers<[1], [0], [0], [1], [0, 0, 1, 1], [], []>} : vector<2x8xbf16>, vector<8x64xbf16>, vector<2x64xf32> -> vector<2x64xf32>
    %74 = tpu.concatenate %67, %69, %71, %73 in 1 : vector<2x64xf32>, vector<2x64xf32>, vector<2x64xf32>, vector<2x64xf32> -> vector<2x256xf32>
    %75 = arith.truncf %74 : vector<2x256xf32> to vector<2x256xbf16>
    %c768 = arith.constant 768 : index
    %c0_43 = arith.constant 0 : index
    %76 = vector.load %arg1[%c768, %c0_43] : memref<1024x128xbf16, #tpu.memory_space<vmem>>, vector<256x128xbf16>
    %cst_44 = arith.constant dense<0.000000e+00> : vector<2x128xf32>
    %77 = tpu.matmul %75, %76, %cst_44 {dimension_numbers = #tpu.dot_dimension_numbers<[1], [0], [0], [1], [0, 0, 1, 1], [], []>} : vector<2x256xbf16>, vector<256x128xbf16>, vector<2x128xf32> -> vector<2x128xf32>
    %c16_45 = arith.constant 16 : index
    %c0_46 = arith.constant 0 : index
    %78 = vector.load %arg2[%c16_45, %c0_46] : memref<24x128xf32, #tpu.memory_space<vmem>>, vector<1x128xf32>
    %79 = vector.broadcast %78 : vector<1x128xf32> to vector<2x128xf32>
    %80 = arith.addf %77, %79 : vector<2x128xf32>
    %c0_47 = arith.constant 0 : index
    %c0_48 = arith.constant 0 : index
    %81 = vector.load %arg3[%c0_47, %c0_48] : memref<2x128xf32, #tpu.memory_space<vmem>>, vector<2x128xf32>
    tpu.vector_store %arg3[%c0_47, %c0_48], %80 {strides = array<i32>} : memref<2x128xf32, #tpu.memory_space<vmem>>, vector<2x128xf32>,
    return
  }
}

</mosaic_0001>

<llo_original>
// kernel: forward.1
$region0: #{forward.1}
  #allocation0 [shape = 'u32[]', space=smem, size = 0x4, offset = 0x4, fixed_abs, tag = 'smem constant byte address 0x4 - core index']
  #allocation1 [shape = 'u32[72,128]{1,0:T(1,128)}', space=vmem, size = 0x9000, scoped, tag = 'internal scratch']
  %s0 = inlined_call_operand.vmem [shape: bf16[32,64], index: 0, kind: input, shape index: {}]
  %s1 = inlined_call_operand.hbm [shape: bf16[1024,128], index: 1, kind: input, shape index: {}]
  %s2 = inlined_call_operand.vmem [shape: f32[24,128], index: 2, kind: input, shape index: {}]
  %s3 = inlined_call_operand.vmem [shape: f32[2,128], index: 3, kind: output, shape index: {}]
  %s4 = sld [smem:[#allocation0]]
  $region26: #{forward.1} parent=0
    _
  %s6 = ssub.s32 1, %s4
  %s7 = scalar_select 0, %s6, %s4
  $region1: #{forward.1} parent=0
    #allocation2 [shape = 'u8[262144]{0}', space=vmem, size = 0x40000, scoped, tag = 'input window, operand 1, single buffered']
    #allocation3 [shape = 's32[1]{0}', space=sflag, size = 0x4, scoped, tag = 'scoped memory for forward.1']
    %8 = vsyncpa [#allocation3], 0
    // Predicated region
    $region2: #{forward.1} parent=1 // pred_check
      _
    $region3: #{forward.1} parent=1 // pred_check_branch
      %10 = sbr.rel (0) target = $region5
    $region4: #{forward.1} parent=1 // pred_region
      _
    $region5: #{forward.1} parent=1 // pred_fallthru
      _
    // Predicated region
    $region6: #{forward.1} parent=1 // pred_check
      _
    $region7: #{forward.1} parent=1 // pred_check_branch
      %12 = sbr.rel (0) target = $region9
    $region8: #{forward.1} parent=1 // pred_region
      %14 = vsyncadd [#allocation3], 0
      %s15 = sshll.u32 %s1, 4
      %s16 = int_to_ptr.hbm [resolvable:$true] %s15
      %s17 = sshll.u32 [#allocation2], 4
      %s18 = int_to_ptr.vmem [resolvable:$true] %s17
      %23 = dma.hbm_to_vmem [thread:$0]  %s16, 8192, %s18, [#allocation3], 64, 64, 4
    $region9: #{forward.1} parent=1 // pred_fallthru
      _
    // Predicated region
    $region10: #{forward.1} parent=1 // pred_check
      _
    $region11: #{forward.1} parent=1 // pred_check_branch
      %25 = sbr.rel (0) target = $region13
    $region12: #{forward.1} parent=1 // pred_region
      _
    $region13: #{forward.1} parent=1 // pred_fallthru
      _
    // Predicated region
    $region14: #{forward.1} parent=1 // pred_check
      _
    $region15: #{forward.1} parent=1 // pred_check_branch
      %27 = sbr.rel (0) target = $region17
    $region16: #{forward.1} parent=1 // pred_region
      %29 = dma.done [#allocation3], 8192
    $region17: #{forward.1} parent=1 // pred_fallthru
      _
    %v31 = vld [vmem:[%s0] sm:$0xf]
    %v32 = vld [vmem:[%s0 + $0x4] sm:$0xf]
    %v33 = vld [vmem:[%s0 + $0x8] sm:$0xf]
    %v34 = vld [vmem:[%s0 + $0xc] sm:$0xf]
    %v35 = vld [vmem:[#allocation2] sm:$0xf]
    %v36 = vld [vmem:[#allocation2 + $0x4] sm:$0xf]
    %v39 = vunpack.c.l.b16 %v35
    %v40 = vunpack.c.l.b16 %v36
    %v41 = vpack.c.b16 %v40, %v39
    %v46 = vunpack.c.l.b16 %v31
    %v47 = vunpack.c.l.b16 %v32
    %v48 = vunpack.c.l.b16 %v33
    %v49 = vunpack.c.l.b16 %v34
    %v50 = vpack.c.b16 %v47, %v46
    %v51 = vpack.c.b16 %v49, %v48
    %vm54 = vcmask 261120
    %v56 = vsel %vm54, %v41, 0
    %58 = vmatpush.bf16.msra.mxu0 0
    %59 = vmatpush.bf16.msra.mxu0 0
    %60 = vmatpush.bf16.msra.mxu0 0
    %61 = vmatpush.bf16.msra.mxu0 0
    %62 = vmatpush.bf16.msra.mxu0 0
    %63 = vmatpush.bf16.msra.mxu0 0
    %64 = vmatpush.bf16.msra.mxu0 %v51
    %65 = vmatpush.bf16.msra.mxu0 %v50
    %66 = vmatmul.bf16.gmra.mxu0 %v56
    %v67 = vpop.f32.mrf.mxu0
    %v68 = vadd.f32 0.0, %v67
    %v69 = vpop.f32.mrf.mxu0
    %v70 = vadd.f32 0.0, %v69
    %71 = vdwg.mxu0
    %v72 = vld [vmem:[#allocation2 + $0x8] sm:$0xf]
    %v73 = vld [vmem:[#allocation2 + $0xc] sm:$0xf]
    %v76 = vunpack.c.l.b16 %v72
    %v77 = vunpack.c.l.b16 %v73
    %v78 = vpack.c.b16 %v77, %v76
    %v80 = vsel %vm54, %v78, 0
    %82 = vmatpush.bf16.msra.mxu0 0
    %83 = vmatpush.bf16.msra.mxu0 0
    %84 = vmatpush.bf16.msra.mxu0 0
    %85 = vmatpush.bf16.msra.mxu0 0
    %86 = vmatpush.bf16.msra.mxu0 0
    %87 = vmatpush.bf16.msra.mxu0 0
    %88 = vmatpush.bf16.msra.mxu0 %v51
    %89 = vmatpush.bf16.msra.mxu0 %v50
    %90 = vmatmul.bf16.gmra.mxu0 %v80
    %v91 = vpop.f32.mrf.mxu0
    %v92 = vadd.f32 0.0, %v91
    %v93 = vpop.f32.mrf.mxu0
    %v94 = vadd.f32 0.0, %v93
    %95 = vdwg.mxu0
    %v96 = vld [vmem:[#allocation2 + $0x10] sm:$0xf]
    %v97 = vld [vmem:[#allocation2 + $0x14] sm:$0xf]
    %v100 = vunpack.c.l.b16 %v96
    %v101 = vunpack.c.l.b16 %v97
    %v102 = vpack.c.b16 %v101, %v100
    %v104 = vsel %vm54, %v102, 0
    %106 = vmatpush.bf16.msra.mxu0 0
    %107 = vmatpush.bf16.msra.mxu0 0
    %108 = vmatpush.bf16.msra.mxu0 0
    %109 = vmatpush.bf16.msra.mxu0 0
    %110 = vmatpush.bf16.msra.mxu0 0
    %111 = vmatpush.bf16.msra.mxu0 0
    %112 = vmatpush.bf16.msra.mxu0 %v51
    %113 = vmatpush.bf16.msra.mxu0 %v50
    %114 = vmatmul.bf16.gmra.mxu0 %v104
    %v115 = vpop.f32.mrf.mxu0
    %v116 = vadd.f32 0.0, %v115
    %v117 = vpop.f32.mrf.mxu0
    %v118 = vadd.f32 0.0, %v117
    %119 = vdwg.mxu0
    %v120 = vld [vmem:[#allocation2 + $0x18] sm:$0xf]
    %v121 = vld [vmem:[#allocation2 + $0x1c] sm:$0xf]
    %v124 = vunpack.c.l.b16 %v120
    %v125 = vunpack.c.l.b16 %v121
    %v126 = vpack.c.b16 %v125, %v124
    %v128 = vsel %vm54, %v126, 0
    %130 = vmatpush.bf16.msra.mxu0 0
    %131 = vmatpush.bf16.msra.mxu0 0
    %132 = vmatpush.bf16.msra.mxu0 0
    %133 = vmatpush.bf16.msra.mxu0 0
    %134 = vmatpush.bf16.msra.mxu0 0
    %135 = vmatpush.bf16.msra.mxu0 0
    %136 = vmatpush.bf16.msra.mxu0 %v51
    %137 = vmatpush.bf16.msra.mxu0 %v50
    %138 = vmatmul.bf16.gmra.mxu0 %v128
    %v139 = vpop.f32.mrf.mxu0
    %v140 = vadd.f32 0.0, %v139
    %v141 = vpop.f32.mrf.mxu0
    %v142 = vadd.f32 0.0, %v141
    %143 = vdwg.mxu0
    %146 = vrot.lane.b32.xlu0 %v92, 64
    %v147 = vpop.permute.xlu0 %146
    %148 = vrot.lane.b32.xlu0 %v94, 64
    %v149 = vpop.permute.xlu0 %148
    %154 = vrot.lane.b32.xlu0 %v140, 64
    %v155 = vpop.permute.xlu0 %154
    %156 = vrot.lane.b32.xlu0 %v142, 64
    %v157 = vpop.permute.xlu0 %156
    %vm160 = vcmask 523264
    %v161 = vsel %vm160, %v68, %v147
    %v162 = vsel %vm160, %v70, %v149
    %v163 = vsel %vm160, %v116, %v155
    %v164 = vsel %vm160, %v118, %v157
    %v165 = vpack.c.bf16 %v162, %v161
    %v166 = vpack.c.bf16 %v164, %v163
    %v167 = vld [vmem:[#allocation2 + $0x20] sm:$0xf]
    %v168 = vld [vmem:[#allocation2 + $0x24] sm:$0xf]
    %v169 = vld [vmem:[#allocation2 + $0x28] sm:$0xf]
    %v170 = vld [vmem:[#allocation2 + $0x2c] sm:$0xf]
    %v171 = vld [vmem:[#allocation2 + $0x30] sm:$0xf]
    %v172 = vld [vmem:[#allocation2 + $0x34] sm:$0xf]
    %v173 = vld [vmem:[#allocation2 + $0x38] sm:$0xf]
    %v174 = vld [vmem:[#allocation2 + $0x3c] sm:$0xf]
    %v175 = vld [vmem:[#allocation2 + $0x40] sm:$0xf]
    %v176 = vld [vmem:[#allocation2 + $0x44] sm:$0xf]
    %v177 = vld [vmem:[#allocation2 + $0x48] sm:$0xf]
    %v178 = vld [vmem:[#allocation2 + $0x4c] sm:$0xf]
    %v179 = vld [vmem:[#allocation2 + $0x50] sm:$0xf]
    %v180 = vld [vmem:[#allocation2 + $0x54] sm:$0xf]
    %v181 = vld [vmem:[#allocation2 + $0x58] sm:$0xf]
    %v182 = vld [vmem:[#allocation2 + $0x5c] sm:$0xf]
    %v183 = vld [vmem:[#allocation2 + $0x60] sm:$0xf]
    %v184 = vld [vmem:[#allocation2 + $0x64] sm:$0xf]
    %v185 = vld [vmem:[#allocation2 + $0x68] sm:$0xf]
    %v186 = vld [vmem:[#allocation2 + $0x6c] sm:$0xf]
    %v187 = vld [vmem:[#allocation2 + $0x70] sm:$0xf]
    %v188 = vld [vmem:[#allocation2 + $0x74] sm:$0xf]
    %v189 = vld [vmem:[#allocation2 + $0x78] sm:$0xf]
    %v190 = vld [vmem:[#allocation2 + $0x7c] sm:$0xf]
    %v191 = vld [vmem:[#allocation2 + $0x80] sm:$0xf]
    %v192 = vld [vmem:[#allocation2 + $0x84] sm:$0xf]
    %v193 = vld [vmem:[#allocation2 + $0x88] sm:$0xf]
    %v194 = vld [vmem:[#allocation2 + $0x8c] sm:$0xf]
    %v195 = vld [vmem:[#allocation2 + $0x90] sm:$0xf]
    %v196 = vld [vmem:[#allocation2 + $0x94] sm:$0xf]
    %v197 = vld [vmem:[#allocation2 + $0x98] sm:$0xf]
    %v198 = vld [vmem:[#allocation2 + $0x9c] sm:$0xf]
    %v231 = vunpack.c.l.b16 %v167
    %v232 = vunpack.c.l.b16 %v168
    %v233 = vunpack.c.l.b16 %v169
    %v234 = vunpack.c.l.b16 %v170
    %v235 = vunpack.c.l.b16 %v171
    %v236 = vunpack.c.l.b16 %v172
    %v237 = vunpack.c.l.b16 %v173
    %v238 = vunpack.c.l.b16 %v174
    %v239 = vunpack.c.l.b16 %v175
    %v240 = vunpack.c.l.b16 %v176
    %v241 = vunpack.c.l.b16 %v177
    %v242 = vunpack.c.l.b16 %v178
    %v243 = vunpack.c.l.b16 %v179
    %v244 = vunpack.c.l.b16 %v180
    %v245 = vunpack.c.l.b16 %v181
    %v246 = vunpack.c.l.b16 %v182
    %v247 = vunpack.c.l.b16 %v183
    %v248 = vunpack.c.l.b16 %v184
    %v249 = vunpack.c.l.b16 %v185
    %v250 = vunpack.c.l.b16 %v186
    %v251 = vunpack.c.l.b16 %v187
    %v252 = vunpack.c.l.b16 %v188
    %v253 = vunpack.c.l.b16 %v189
    %v254 = vunpack.c.l.b16 %v190
    %v255 = vunpack.c.l.b16 %v191
    %v256 = vunpack.c.l.b16 %v192
    %v257 = vunpack.c.l.b16 %v193
    %v258 = vunpack.c.l.b16 %v194
    %v259 = vunpack.c.l.b16 %v195
    %v260 = vunpack.c.l.b16 %v196
    %v261 = vunpack.c.l.b16 %v197
    %v262 = vunpack.c.l.b16 %v198
    %v263 = vpack.c.b16 %v232, %v231
    %v264 = vpack.c.b16 %v234, %v233
    %v265 = vpack.c.b16 %v236, %v235
    %v266 = vpack.c.b16 %v238, %v237
    %v267 = vpack.c.b16 %v240, %v239
    %v268 = vpack.c.b16 %v242, %v241
    %v269 = vpack.c.b16 %v244, %v243
    %v270 = vpack.c.b16 %v246, %v245
    %v271 = vpack.c.b16 %v248, %v247
    %v272 = vpack.c.b16 %v250, %v249
    %v273 = vpack.c.b16 %v252, %v251
    %v274 = vpack.c.b16 %v254, %v253
    %v275 = vpack.c.b16 %v256, %v255
    %v276 = vpack.c.b16 %v258, %v257
    %v277 = vpack.c.b16 %v260, %v259
    %v278 = vpack.c.b16 %v262, %v261
    %295 = vmatpush.bf16.msra.mxu0 %v270
    %296 = vmatpush.bf16.msra.mxu0 %v269
    %297 = vmatpush.bf16.msra.mxu0 %v268
    %298 = vmatpush.bf16.msra.mxu0 %v267
    %299 = vmatpush.bf16.msra.mxu0 %v266
    %300 = vmatpush.bf16.msra.mxu0 %v265
    %301 = vmatpush.bf16.msra.mxu0 %v264
    %302 = vmatpush.bf16.msra.mxu0 %v263
    %303 = vmatmul.bf16.gmra.mxu0 %v165
    %v304 = vpop.f32.mrf.mxu0
    %v305 = vadd.f32 0.0, %v304
    %v306 = vpop.f32.mrf.mxu0
    %v307 = vadd.f32 0.0, %v306
    %308 = vdwg.mxu0
    %309 = vmatpush.bf16.msra.mxu0 %v278
    %310 = vmatpush.bf16.msra.mxu0 %v277
    %311 = vmatpush.bf16.msra.mxu0 %v276
    %312 = vmatpush.bf16.msra.mxu0 %v275
    %313 = vmatpush.bf16.msra.mxu0 %v274
    %314 = vmatpush.bf16.msra.mxu0 %v273
    %315 = vmatpush.bf16.msra.mxu0 %v272
    %316 = vmatpush.bf16.msra.mxu0 %v271
    %317 = vmatmul.bf16.gmra.mxu0 %v166
    %v318 = vpop.f32.mrf.mxu0
    %v319 = vadd.f32 %v305, %v318
    %v320 = vpop.f32.mrf.mxu0
    %v321 = vadd.f32 %v307, %v320
    %322 = vdwg.mxu0
    %vm323 = vcmp.gt.f32.partialorder %v319, 0.0
    %vm324 = vcmp.gt.f32.partialorder %v321, 0.0
    %v325 = vmul.f32 %v319, 0.2
    %v326 = vmul.f32 %v321, 0.2
    %v327 = vsel %vm323, %v319, %v325
    %v328 = vsel %vm324, %v321, %v326
    %v329 = vpack.c.bf16 %v328, %v327
    %v330 = vld [vmem:[#allocation2 + $0xa0] sm:$0xf]
    %vm331 = vcmask 130048
    %v333 = vsel %vm331, %v330, 0
    %335 = vmatpush.bf16.msra.mxu0 0
    %336 = vmatpush.bf16.msra.mxu0 0
    %337 = vmatpush.bf16.msra.mxu0 0
    %338 = vmatpush.bf16.msra.mxu0 0
    %339 = vmatpush.bf16.msra.mxu0 0
    %340 = vmatpush.bf16.msra.mxu0 0
    %341 = vmatpush.bf16.msra.mxu0 0
    %342 = vmatpush.bf16.msra.mxu0 %v329
    %343 = vmatmul.bf16.gmra.mxu0 %v333
    %v344 = vpop.f32.mrf.mxu0
    %v345 = vadd.f32 0.0, %v344
    %v346 = vpop.f32.mrf.mxu0
    %347 = vdwg.mxu0
    %v348 = vld [vmem:[#allocation2 + $0xa8] sm:$0xf]
    %v350 = vsel %vm331, %v348, 0
    %352 = vmatpush.bf16.msra.mxu0 0
    %353 = vmatpush.bf16.msra.mxu0 0
    %354 = vmatpush.bf16.msra.mxu0 0
    %355 = vmatpush.bf16.msra.mxu0 0
    %356 = vmatpush.bf16.msra.mxu0 0
    %357 = vmatpush.bf16.msra.mxu0 0
    %358 = vmatpush.bf16.msra.mxu0 0
    %359 = vmatpush.bf16.msra.mxu0 %v329
    %360 = vmatmul.bf16.gmra.mxu0 %v350
    %v361 = vpop.f32.mrf.mxu0
    %v362 = vadd.f32 0.0, %v361
    %v363 = vpop.f32.mrf.mxu0
    %364 = vdwg.mxu0
    %v365 = vld [vmem:[#allocation2 + $0xb0] sm:$0xf]
    %v367 = vsel %vm331, %v365, 0
    %369 = vmatpush.bf16.msra.mxu0 0
    %370 = vmatpush.bf16.msra.mxu0 0
    %371 = vmatpush.bf16.msra.mxu0 0
    %372 = vmatpush.bf16.msra.mxu0 0
    %373 = vmatpush.bf16.msra.mxu0 0
    %374 = vmatpush.bf16.msra.mxu0 0
    %375 = vmatpush.bf16.msra.mxu0 0
    %376 = vmatpush.bf16.msra.mxu0 %v329
    %377 = vmatmul.bf16.gmra.mxu0 %v367
    %v378 = vpop.f32.mrf.mxu0
    %v379 = vadd.f32 0.0, %v378
    %v380 = vpop.f32.mrf.mxu0
    %381 = vdwg.mxu0
    %v382 = vld [vmem:[#allocation2 + $0xb8] sm:$0xf]
    %v384 = vsel %vm331, %v382, 0
    %386 = vmatpush.bf16.msra.mxu0 0
    %387 = vmatpush.bf16.msra.mxu0 0
    %388 = vmatpush.bf16.msra.mxu0 0
    %389 = vmatpush.bf16.msra.mxu0 0
    %390 = vmatpush.bf16.msra.mxu0 0
    %391 = vmatpush.bf16.msra.mxu0 0
    %392 = vmatpush.bf16.msra.mxu0 0
    %393 = vmatpush.bf16.msra.mxu0 %v329
    %394 = vmatmul.bf16.gmra.mxu0 %v384
    %v395 = vpop.f32.mrf.mxu0
    %v396 = vadd.f32 0.0, %v395
    %v397 = vpop.f32.mrf.mxu0
    %398 = vdwg.mxu0
    %400 = vrot.lane.b32.xlu0 %v362, 64
    %v401 = vpop.permute.xlu0 %400
    %404 = vrot.lane.b32.xlu0 %v396, 64
    %v405 = vpop.permute.xlu0 %404
    %v407 = vsel %vm160, %v345, %v401
    %v408 = vsel %vm160, %v379, %v405
    %v409 = vpack.c.bf16 %v407, %v407
    %v410 = vpack.c.bf16 %v408, %v408
    %v411 = vld [vmem:[#allocation2 + $0xc0] sm:$0xf]
    %v412 = vld [vmem:[#allocation2 + $0xc4] sm:$0xf]
    %v413 = vld [vmem:[#allocation2 + $0xc8] sm:$0xf]
    %v414 = vld [vmem:[#allocation2 + $0xcc] sm:$0xf]
    %v415 = vld [vmem:[#allocation2 + $0xd0] sm:$0xf]
    %v416 = vld [vmem:[#allocation2 + $0xd4] sm:$0xf]
    %v417 = vld [vmem:[#allocation2 + $0xd8] sm:$0xf]
    %v418 = vld [vmem:[#allocation2 + $0xdc] sm:$0xf]
    %v419 = vld [vmem:[#allocation2 + $0xe0] sm:$0xf]
    %v420 = vld [vmem:[#allocation2 + $0xe4] sm:$0xf]
    %v421 = vld [vmem:[#allocation2 + $0xe8] sm:$0xf]
    %v422 = vld [vmem:[#allocation2 + $0xec] sm:$0xf]
    %v423 = vld [vmem:[#allocation2 + $0xf0] sm:$0xf]
    %v424 = vld [vmem:[#allocation2 + $0xf4] sm:$0xf]
    %v425 = vld [vmem:[#allocation2 + $0xf8] sm:$0xf]
    %v426 = vld [vmem:[#allocation2 + $0xfc] sm:$0xf]
    %v427 = vld [vmem:[#allocation2 + $0x100] sm:$0xf]
    %v428 = vld [vmem:[#allocation2 + $0x104] sm:$0xf]
    %v429 = vld [vmem:[#allocation2 + $0x108] sm:$0xf]
    %v430 = vld [vmem:[#allocation2 + $0x10c] sm:$0xf]
    %v431 = vld [vmem:[#allocation2 + $0x110] sm:$0xf]
    %v432 = vld [vmem:[#allocation2 + $0x114] sm:$0xf]
    %v433 = vld [vmem:[#allocation2 + $0x118] sm:$0xf]
    %v434 = vld [vmem:[#allocation2 + $0x11c] sm:$0xf]
    %v435 = vld [vmem:[#allocation2 + $0x120] sm:$0xf]
    %v436 = vld [vmem:[#allocation2 + $0x124] sm:$0xf]
    %v437 = vld [vmem:[#allocation2 + $0x128] sm:$0xf]
    %v438 = vld [vmem:[#allocation2 + $0x12c] sm:$0xf]
    %v439 = vld [vmem:[#allocation2 + $0x130] sm:$0xf]
    %v440 = vld [vmem:[#allocation2 + $0x134] sm:$0xf]
    %v441 = vld [vmem:[#allocation2 + $0x138] sm:$0xf]
    %v442 = vld [vmem:[#allocation2 + $0x13c] sm:$0xf]
    %v475 = vunpack.c.l.b16 %v411
    %v476 = vunpack.c.l.b16 %v412
    %v477 = vunpack.c.l.b16 %v413
    %v478 = vunpack.c.l.b16 %v414
    %v479 = vunpack.c.l.b16 %v415
    %v480 = vunpack.c.l.b16 %v416
    %v481 = vunpack.c.l.b16 %v417
    %v482 = vunpack.c.l.b16 %v418
    %v483 = vunpack.c.l.b16 %v419
    %v484 = vunpack.c.l.b16 %v420
    %v485 = vunpack.c.l.b16 %v421
    %v486 = vunpack.c.l.b16 %v422
    %v487 = vunpack.c.l.b16 %v423
    %v488 = vunpack.c.l.b16 %v424
    %v489 = vunpack.c.l.b16 %v425
    %v490 = vunpack.c.l.b16 %v426
    %v491 = vunpack.c.l.b16 %v427
    %v492 = vunpack.c.l.b16 %v428
    %v493 = vunpack.c.l.b16 %v429
    %v494 = vunpack.c.l.b16 %v430
    %v495 = vunpack.c.l.b16 %v431
    %v496 = vunpack.c.l.b16 %v432
    %v497 = vunpack.c.l.b16 %v433
    %v498 = vunpack.c.l.b16 %v434
    %v499 = vunpack.c.l.b16 %v435
    %v500 = vunpack.c.l.b16 %v436
    %v501 = vunpack.c.l.b16 %v437
    %v502 = vunpack.c.l.b16 %v438
    %v503 = vunpack.c.l.b16 %v439
    %v504 = vunpack.c.l.b16 %v440
    %v505 = vunpack.c.l.b16 %v441
    %v506 = vunpack.c.l.b16 %v442
    %v507 = vpack.c.b16 %v476, %v475
    %v508 = vpack.c.b16 %v478, %v477
    %v509 = vpack.c.b16 %v480, %v479
    %v510 = vpack.c.b16 %v482, %v481
    %v511 = vpack.c.b16 %v484, %v483
    %v512 = vpack.c.b16 %v486, %v485
    %v513 = vpack.c.b16 %v488, %v487
    %v514 = vpack.c.b16 %v490, %v489
    %v515 = vpack.c.b16 %v492, %v491
    %v516 = vpack.c.b16 %v494, %v493
    %v517 = vpack.c.b16 %v496, %v495
    %v518 = vpack.c.b16 %v498, %v497
    %v519 = vpack.c.b16 %v500, %v499
    %v520 = vpack.c.b16 %v502, %v501
    %v521 = vpack.c.b16 %v504, %v503
    %v522 = vpack.c.b16 %v506, %v505
    %539 = vmatpush.bf16.msra.mxu0 %v514
    %540 = vmatpush.bf16.msra.mxu0 %v513
    %541 = vmatpush.bf16.msra.mxu0 %v512
    %542 = vmatpush.bf16.msra.mxu0 %v511
    %543 = vmatpush.bf16.msra.mxu0 %v510
    %544 = vmatpush.bf16.msra.mxu0 %v509
    %545 = vmatpush.bf16.msra.mxu0 %v508
    %546 = vmatpush.bf16.msra.mxu0 %v507
    %547 = vmatmul.bf16.gmra.mxu0 %v409
    %v548 = vpop.f32.mrf.mxu0
    %v549 = vadd.f32 0.0, %v548
    %v550 = vpop.f32.mrf.mxu0
    %551 = vdwg.mxu0
    %552 = vmatpush.bf16.msra.mxu0 %v522
    %553 = vmatpush.bf16.msra.mxu0 %v521
    %554 = vmatpush.bf16.msra.mxu0 %v520
    %555 = vmatpush.bf16.msra.mxu0 %v519
    %556 = vmatpush.bf16.msra.mxu0 %v518
    %557 = vmatpush.bf16.msra.mxu0 %v517
    %558 = vmatpush.bf16.msra.mxu0 %v516
    %559 = vmatpush.bf16.msra.mxu0 %v515
    %560 = vmatmul.bf16.gmra.mxu0 %v410
    %v561 = vpop.f32.mrf.mxu0
    %v562 = vadd.f32 %v549, %v561
    %v563 = vpop.f32.mrf.mxu0
    %564 = vdwg.mxu0
    %v565 = vsel %vm160, %v562, 0.0
    %v566 = vrot.slane %v565, 4
    %v567 = vadd.f32 %v565, %v566
    %v568 = vrot.slane %v567, 2
    %v569 = vadd.f32 %v567, %v568
    %v570 = vrot.slane %v569, 1
    %v571 = vadd.f32 %v569, %v570
    %v572 = vmul.f32 %v562, %v562
    %v573 = vsel %vm160, %v572, 0.0
    %v574 = vrot.slane %v573, 4
    %v575 = vadd.f32 %v573, %v574
    %v576 = vrot.slane %v575, 2
    %v577 = vadd.f32 %v575, %v576
    %v578 = vrot.slane %v577, 1
    %v579 = vadd.f32 %v577, %v578
    %vm580 = vcmask 1040384
    %v581 = vsel %vm580, %v571, %v579
    %v582 = vpack.c.bf16 %v581, %v581
    %v583 = vld [vmem:[#allocation2 + $0x140] sm:$0xf]
    %v584 = vld [vmem:[#allocation2 + $0x144] sm:$0xf]
    %v585 = vld [vmem:[#allocation2 + $0x148] sm:$0xf]
    %v586 = vld [vmem:[#allocation2 + $0x14c] sm:$0xf]
    %v587 = vld [vmem:[#allocation2 + $0x150] sm:$0xf]
    %v588 = vld [vmem:[#allocation2 + $0x154] sm:$0xf]
    %v589 = vld [vmem:[#allocation2 + $0x158] sm:$0xf]
    %v590 = vld [vmem:[#allocation2 + $0x15c] sm:$0xf]
    %v599 = vunpack.c.l.b16 %v583
    %v600 = vunpack.c.l.b16 %v584
    %v601 = vunpack.c.l.b16 %v585
    %v602 = vunpack.c.l.b16 %v586
    %v603 = vunpack.c.l.b16 %v587
    %v604 = vunpack.c.l.b16 %v588
    %v605 = vunpack.c.l.b16 %v589
    %v606 = vunpack.c.l.b16 %v590
    %v607 = vpack.c.b16 %v600, %v599
    %v608 = vpack.c.b16 %v602, %v601
    %v609 = vpack.c.b16 %v604, %v603
    %v610 = vpack.c.b16 %v606, %v605
    %v616 = vsel %vm160, %v582, 0
    %618 = vmatpush.bf16.msra.mxu0 0
    %619 = vmatpush.bf16.msra.mxu0 0
    %620 = vmatpush.bf16.msra.mxu0 0
    %621 = vmatpush.bf16.msra.mxu0 0
    %622 = vmatpush.bf16.msra.mxu0 %v610
    %623 = vmatpush.bf16.msra.mxu0 %v609
    %624 = vmatpush.bf16.msra.mxu0 %v608
    %625 = vmatpush.bf16.msra.mxu0 %v607
    %626 = vmatmul.bf16.gmra.mxu0 %v616
    %v627 = vpop.f32.mrf.mxu0
    %v628 = vadd.f32 0.0, %v627
    %v629 = vpop.f32.mrf.mxu0
    %630 = vdwg.mxu0
    %v631 = vmul.f32 %v628, 0.03125
    %v632 = vmul.f32 %v631, %v631
    %v634 = vrot.slane %v632, 7
    %v636 = vsub.f32 %v631, %v634
    %v637 = vmax.f32 %v636, 0.0
    %v638 = vld [vmem:[%s2] sm:$0x1]
    %v639 = vadd.f32 %v637, 1e-05
    %v640 = vrsqrt.pop %v639
    %v641 = vmul.f32 %v640, %v639
    %v642 = vmul.f32 %v641, %v640
    %v643 = vmul.f32 0.5, %v642
    %v644 = vsub.f32 1.5, %v643
    %v645 = vmul.f32 %v640, %v644
    %vm646 = vweird.f32 %v639
    %vm647 = vweird.f32 %v640
    %vm648 = vmor %vm646, %vm647
    %v649 = vsel %vm648, %v640, %v645
    %v651 = vrot.slane %v649, 1
    %v653 = vmul.f32 %v638, %v651
    %v654 = vld [vmem:[%s2 + $0x8] sm:$0x1]
    %v655 = vmul.f32 %v631, %v653
    %v656 = vsub.f32 %v654, %v655
    %v657 = vperm.slane %v653, 0
    %v658 = vmul.f32 %v562, %v657
    %v659 = vperm.slane %v656, 0
    %v660 = vadd.f32 %v658, %v659
    %vm661 = vcmp.gt.f32.partialorder %v660, 0.0
    %v662 = vmul.f32 %v660, 0.2
    %v663 = vsel %vm661, %v660, %v662
    %v664 = vpack.c.bf16 %v663, %v663
    %v665 = vld [vmem:[#allocation2 + $0x160] sm:$0x1]
    %vm666 = vcmask 64512
    %v668 = vsel %vm666, %v665, 0
    %vm670 = vcmask 1043456
    %v672 = vsel %vm670, %v664, 0
    %674 = vmatpush.bf16.msra.mxu0 0
    %675 = vmatpush.bf16.msra.mxu0 0
    %676 = vmatpush.bf16.msra.mxu0 0
    %677 = vmatpush.bf16.msra.mxu0 0
    %678 = vmatpush.bf16.msra.mxu0 0
    %679 = vmatpush.bf16.msra.mxu0 0
    %680 = vmatpush.bf16.msra.mxu0 0
    %681 = vmatpush.bf16.msra.mxu0 %v672
    %682 = vmatmul.bf16.gmra.mxu0 %v668
    %v683 = vpop.f32.mrf.mxu0
    %v684 = vadd.f32 0.0, %v683
    %v685 = vpop.f32.mrf.mxu0
    %686 = vdwg.mxu0
    %v687 = vld [vmem:[#allocation2 + $0x168] sm:$0x1]
    %v689 = vsel %vm666, %v687, 0
    %691 = vmatpush.bf16.msra.mxu0 0
    %692 = vmatpush.bf16.msra.mxu0 0
    %693 = vmatpush.bf16.msra.mxu0 0
    %694 = vmatpush.bf16.msra.mxu0 0
    %695 = vmatpush.bf16.msra.mxu0 0
    %696 = vmatpush.bf16.msra.mxu0 0
    %697 = vmatpush.bf16.msra.mxu0 0
    %698 = vmatpush.bf16.msra.mxu0 %v672
    %699 = vmatmul.bf16.gmra.mxu0 %v689
    %v700 = vpop.f32.mrf.mxu0
    %v701 = vadd.f32 0.0, %v700
    %v702 = vpop.f32.mrf.mxu0
    %703 = vdwg.mxu0
    %v704 = vld [vmem:[#allocation2 + $0x170] sm:$0x1]
    %v706 = vsel %vm666, %v704, 0
    %708 = vmatpush.bf16.msra.mxu0 0
    %709 = vmatpush.bf16.msra.mxu0 0
    %710 = vmatpush.bf16.msra.mxu0 0
    %711 = vmatpush.bf16.msra.mxu0 0
    %712 = vmatpush.bf16.msra.mxu0 0
    %713 = vmatpush.bf16.msra.mxu0 0
    %714 = vmatpush.bf16.msra.mxu0 0
    %715 = vmatpush.bf16.msra.mxu0 %v672
    %716 = vmatmul.bf16.gmra.mxu0 %v706
    %v717 = vpop.f32.mrf.mxu0
    %v718 = vadd.f32 0.0, %v717
    %v719 = vpop.f32.mrf.mxu0
    %720 = vdwg.mxu0
    %v721 = vld [vmem:[#allocation2 + $0x178] sm:$0x1]
    %v723 = vsel %vm666, %v721, 0
    %725 = vmatpush.bf16.msra.mxu0 0
    %726 = vmatpush.bf16.msra.mxu0 0
    %727 = vmatpush.bf16.msra.mxu0 0
    %728 = vmatpush.bf16.msra.mxu0 0
    %729 = vmatpush.bf16.msra.mxu0 0
    %730 = vmatpush.bf16.msra.mxu0 0
    %731 = vmatpush.bf16.msra.mxu0 0
    %732 = vmatpush.bf16.msra.mxu0 %v672
    %733 = vmatmul.bf16.gmra.mxu0 %v723
    %v734 = vpop.f32.mrf.mxu0
    %v735 = vadd.f32 0.0, %v734
    %v736 = vpop.f32.mrf.mxu0
    %737 = vdwg.mxu0
    %739 = vrot.lane.b32.xlu0 %v701, 64
    %v740 = vpop.permute.xlu0 %739
    %743 = vrot.lane.b32.xlu0 %v735, 64
    %v744 = vpop.permute.xlu0 %743
    %v746 = vsel %vm160, %v684, %v740
    %v747 = vsel %vm160, %v718, %v744
    %v748 = vpack.c.bf16 %v746, %v746
    %v749 = vpack.c.bf16 %v747, %v747
    %v750 = vld [vmem:[#allocation2 + $0x180] sm:$0xf]
    %v751 = vld [vmem:[#allocation2 + $0x184] sm:$0xf]
    %v752 = vld [vmem:[#allocation2 + $0x188] sm:$0xf]
    %v753 = vld [vmem:[#allocation2 + $0x18c] sm:$0xf]
    %v754 = vld [vmem:[#allocation2 + $0x190] sm:$0xf]
    %v755 = vld [vmem:[#allocation2 + $0x194] sm:$0xf]
    %v756 = vld [vmem:[#allocation2 + $0x198] sm:$0xf]
    %v757 = vld [vmem:[#allocation2 + $0x19c] sm:$0xf]
    %v758 = vld [vmem:[#allocation2 + $0x1a0] sm:$0xf]
    %v759 = vld [vmem:[#allocation2 + $0x1a4] sm:$0xf]
    %v760 = vld [vmem:[#allocation2 + $0x1a8] sm:$0xf]
    %v761 = vld [vmem:[#allocation2 + $0x1ac] sm:$0xf]
    %v762 = vld [vmem:[#allocation2 + $0x1b0] sm:$0xf]
    %v763 = vld [vmem:[#allocation2 + $0x1b4] sm:$0xf]
    %v764 = vld [vmem:[#allocation2 + $0x1b8] sm:$0xf]
    %v765 = vld [vmem:[#allocation2 + $0x1bc] sm:$0xf]
    %v766 = vld [vmem:[#allocation2 + $0x1c0] sm:$0xf]
    %v767 = vld [vmem:[#allocation2 + $0x1c4] sm:$0xf]
    %v768 = vld [vmem:[#allocation2 + $0x1c8] sm:$0xf]
    %v769 = vld [vmem:[#allocation2 + $0x1cc] sm:$0xf]
    %v770 = vld [vmem:[#allocation2 + $0x1d0] sm:$0xf]
    %v771 = vld [vmem:[#allocation2 + $0x1d4] sm:$0xf]
    %v772 = vld [vmem:[#allocation2 + $0x1d8] sm:$0xf]
    %v773 = vld [vmem:[#allocation2 + $0x1dc] sm:$0xf]
    %v774 = vld [vmem:[#allocation2 + $0x1e0] sm:$0xf]
    %v775 = vld [vmem:[#allocation2 + $0x1e4] sm:$0xf]
    %v776 = vld [vmem:[#allocation2 + $0x1e8] sm:$0xf]
    %v777 = vld [vmem:[#allocation2 + $0x1ec] sm:$0xf]
    %v778 = vld [vmem:[#allocation2 + $0x1f0] sm:$0xf]
    %v779 = vld [vmem:[#allocation2 + $0x1f4] sm:$0xf]
    %v780 = vld [vmem:[#allocation2 + $0x1f8] sm:$0xf]
    %v781 = vld [vmem:[#allocation2 + $0x1fc] sm:$0xf]
    %v782 = vld [vmem:[%s2 + $0x10] sm:$0x1]
    %v783 = vperm.slane %v782, 0
    %v816 = vunpack.c.l.b16 %v750
    %v817 = vunpack.c.l.b16 %v751
    %v818 = vunpack.c.l.b16 %v752
    %v819 = vunpack.c.l.b16 %v753
    %v820 = vunpack.c.l.b16 %v754
    %v821 = vunpack.c.l.b16 %v755
    %v822 = vunpack.c.l.b16 %v756
    %v823 = vunpack.c.l.b16 %v757
    %v824 = vunpack.c.l.b16 %v758
    %v825 = vunpack.c.l.b16 %v759
    %v826 = vunpack.c.l.b16 %v760
    %v827 = vunpack.c.l.b16 %v761
    %v828 = vunpack.c.l.b16 %v762
    %v829 = vunpack.c.l.b16 %v763
    %v830 = vunpack.c.l.b16 %v764
    %v831 = vunpack.c.l.b16 %v765
    %v832 = vunpack.c.l.b16 %v766
    %v833 = vunpack.c.l.b16 %v767
    %v834 = vunpack.c.l.b16 %v768
    %v835 = vunpack.c.l.b16 %v769
    %v836 = vunpack.c.l.b16 %v770
    %v837 = vunpack.c.l.b16 %v771
    %v838 = vunpack.c.l.b16 %v772
    %v839 = vunpack.c.l.b16 %v773
    %v840 = vunpack.c.l.b16 %v774
    %v841 = vunpack.c.l.b16 %v775
    %v842 = vunpack.c.l.b16 %v776
    %v843 = vunpack.c.l.b16 %v777
    %v844 = vunpack.c.l.b16 %v778
    %v845 = vunpack.c.l.b16 %v779
    %v846 = vunpack.c.l.b16 %v780
    %v847 = vunpack.c.l.b16 %v781
    %v848 = vpack.c.b16 %v817, %v816
    %v849 = vpack.c.b16 %v819, %v818
    %v850 = vpack.c.b16 %v821, %v820
    %v851 = vpack.c.b16 %v823, %v822
    %v852 = vpack.c.b16 %v825, %v824
    %v853 = vpack.c.b16 %v827, %v826
    %v854 = vpack.c.b16 %v829, %v828
    %v855 = vpack.c.b16 %v831, %v830
    %v856 = vpack.c.b16 %v833, %v832
    %v857 = vpack.c.b16 %v835, %v834
    %v858 = vpack.c.b16 %v837, %v836
    %v859 = vpack.c.b16 %v839, %v838
    %v860 = vpack.c.b16 %v841, %v840
    %v861 = vpack.c.b16 %v843, %v842
    %v862 = vpack.c.b16 %v845, %v844
    %v863 = vpack.c.b16 %v847, %v846
    %880 = vmatpush.bf16.msra.mxu0 %v855
    %881 = vmatpush.bf16.msra.mxu0 %v854
    %882 = vmatpush.bf16.msra.mxu0 %v853
    %883 = vmatpush.bf16.msra.mxu0 %v852
    %884 = vmatpush.bf16.msra.mxu0 %v851
    %885 = vmatpush.bf16.msra.mxu0 %v850
    %886 = vmatpush.bf16.msra.mxu0 %v849
    %887 = vmatpush.bf16.msra.mxu0 %v848
    %888 = vmatmul.bf16.gmra.mxu0 %v748
    %v889 = vpop.f32.mrf.mxu0
    %v890 = vadd.f32 %v783, %v889
    %v891 = vpop.f32.mrf.mxu0
    %892 = vdwg.mxu0
    %893 = vmatpush.bf16.msra.mxu0 %v863
    %894 = vmatpush.bf16.msra.mxu0 %v862
    %895 = vmatpush.bf16.msra.mxu0 %v861
    %896 = vmatpush.bf16.msra.mxu0 %v860
    %897 = vmatpush.bf16.msra.mxu0 %v859
    %898 = vmatpush.bf16.msra.mxu0 %v858
    %899 = vmatpush.bf16.msra.mxu0 %v857
    %900 = vmatpush.bf16.msra.mxu0 %v856
    %901 = vmatmul.bf16.gmra.mxu0 %v749
    %v902 = vpop.f32.mrf.mxu0
    %v903 = vadd.f32 %v890, %v902
    %v904 = vpop.f32.mrf.mxu0
    %905 = vdwg.mxu0
    %906 = vst [vmem:[%s3] sm:$0x3] %v903
    // Predicated region
    $region18: #{forward.1} parent=1 // pred_check
      _
    $region19: #{forward.1} parent=1 // pred_check_branch
      %908 = sbr.rel (0) target = $region21
    $region20: #{forward.1} parent=1 // pred_region
      _
    $region21: #{forward.1} parent=1 // pred_fallthru
      _
    // Predicated region
    $region22: #{forward.1} parent=1 // pred_check
      _
    $region23: #{forward.1} parent=1 // pred_check_branch
      %910 = sbr.rel (0) target = $region25
    $region24: #{forward.1} parent=1 // pred_region
      _
    $region25: #{forward.1} parent=1 // pred_fallthru
      _
    %911 = vsyncpa [#allocation3], 1

</llo_original>
